<compile_context>
chip_gen: v7x
topology: tpu7x:2x2x1
jax: 0.10.0
libtpu: 0.0.40
codegen_flags: <defaults>
</compile_context>

<pallas_src>
import jax
import jax.numpy as jnp
from jax.experimental import pallas as pl
from jax.experimental.pallas import tpu as pltpu


def _round_up(x, m):
    return ((x + m - 1) // m) * m


def control_vec_kernel(x_ref,
                       w1_ref, b1_ref,
                       w2_ref, b2_ref,
                       w3_ref, b3_ref,
                       o_ref):
    """Fused MLP: (in -> 128) ReLU (128 -> 256) ReLU (256 -> out)."""
    x = x_ref[...].astype(jnp.bfloat16)                        # bf16 MXU inputs
    h = jnp.dot(x, w1_ref[...], preferred_element_type=jnp.float32) + b1_ref[...]
    h = jnp.maximum(h, 0.0).astype(jnp.bfloat16)               # ReLU in f32, recast
    h = jnp.dot(h, w2_ref[...], preferred_element_type=jnp.float32) + b2_ref[...]
    h = jnp.maximum(h, 0.0).astype(jnp.bfloat16)
    o_ref[...] = (
        jnp.dot(h, w3_ref[...], preferred_element_type=jnp.float32) + b3_ref[...])


def control_vec_forward(x, params, *, tb=4096, vmem_budget_bytes=12 << 20):
    """x: [..., input_size]; params: [(w [in,out] f32, b [1,out] f32)] * 3."""
    (w1, b1), (w2, b2), (w3, b3) = params
    input_size = w1.shape[0]
    output_size = w3.shape[1]

    lead = x.shape[:-1]
    x2 = x.reshape(-1, input_size)          # no dtype copy; kernel casts to bf16
    B = x2.shape[0]
    if B == 0:                              # degenerate batch
        return jnp.zeros((*lead, output_size), jnp.float32)

    # --- batch tile sizing -------------------------------------------------
    # Per-row VMEM estimate: double-buffered x & out tiles + f32/bf16 hidden
    # activations.  Budget is conservative enough for v5e's 16 MiB scoped
    # default and v7x's 64 MiB physical VMEM; weights (<0.5 MiB bf16) ride on
    # the headroom.
    x_bytes = jnp.dtype(x2.dtype).itemsize
    per_row = (2 * input_size * x_bytes          # x double-buffer
               + 2 * output_size * 4             # out double-buffer (f32)
               + (128 + 256) * (4 + 2))          # f32 + bf16 hidden activations
    budget_rows = max(256, (vmem_budget_bytes // per_row) // 256 * 256)

    tb_eff = min(tb, budget_rows, _round_up(B, 256))
    if B > 256:
        # Guarantee >= 2 grid steps so both v7x TensorCores get work.
        tb_eff = min(tb_eff, _round_up(pl.cdiv(B, 2), 256))

    grid = (pl.cdiv(B, tb_eff),)            # partial last block handled by Pallas

    # bf16 weights for the MXU; biases stay f32.
    w1b = w1.astype(jnp.bfloat16)
    w2b = w2.astype(jnp.bfloat16)
    w3b = w3.astype(jnp.bfloat16)

    def resident(shape):
        # Full-array block, constant index_map -> fetched once, stays in VMEM.
        return pl.BlockSpec(shape, lambda i: (0, 0))

    out = pl.pallas_call(
        control_vec_kernel,
        out_shape=jax.ShapeDtypeStruct((B, output_size), jnp.float32),
        grid=grid,
        in_specs=[
            pl.BlockSpec((tb_eff, input_size), lambda i: (i, 0)),   # x batch tile
            resident(w1b.shape), resident(b1.shape),
            resident(w2b.shape), resident(b2.shape),
            resident(w3b.shape), resident(b3.shape),
        ],
        out_specs=pl.BlockSpec((tb_eff, output_size), lambda i: (i, 0)),
        compiler_params=pltpu.CompilerParams(
            dimension_semantics=("parallel",),
            vmem_limit_bytes=32 * 1024 * 1024),
    )(x2, w1b, b1, w2b, b2, w3b, b3)

    return out.reshape(*lead, output_size)


def init_params(key, input_size, output_size):
    """Deterministic init mimicking nn.Linear (uniform +/- 1/sqrt(fan_in))."""
    dims = [input_size, 128, 256, output_size]
    params = []
    for i in range(3):
        key, kw, kb = jax.random.split(key, 3)
        fan_in = dims[i]
        bound = 1.0 / float(fan_in) ** 0.5
        w = jax.random.uniform(kw, (dims[i], dims[i + 1]), jnp.float32, -bound, bound)
        b = jax.random.uniform(kb, (1, dims[i + 1]), jnp.float32, -bound, bound)
        params.append((w, b))
    return params


def control_vec_reference(x, params):
    """Pure-JAX reference with the same bf16-matmul / f32-accumulate numerics."""
    (w1, b1), (w2, b2), (w3, b3) = params

    def mm(a, w):
        return jnp.dot(a.astype(jnp.bfloat16), w.astype(jnp.bfloat16),
                       preferred_element_type=jnp.float32)

    x = x.astype(jnp.float32)
    h = jnp.maximum(mm(x, w1) + b1, 0.0)
    h = jnp.maximum(mm(h, w2) + b2, 0.0)
    return mm(h, w3) + b3


if __name__ == "__main__":
    input_size = 32
    output_size = 16

    key = jax.random.PRNGKey(0)
    k_params, k_x1, k_x2 = jax.random.split(key, 3)
    params = init_params(k_params, input_size, output_size)

    # Small batch: single (partial) grid step.
    x_small = jax.random.normal(k_x1, (4, input_size), jnp.float32)
    out_small = jax.block_until_ready(control_vec_forward(x_small, params))
    ref_small = control_vec_reference(x_small, params)
    assert out_small.shape == (4, output_size)
    assert jnp.allclose(out_small, ref_small, atol=2e-3, rtol=2e-3), \
        float(jnp.max(jnp.abs(out_small - ref_small)))

    # Larger batch: exercises >=2 grid steps plus a partial last block.
    x_big = jax.random.normal(k_x2, (600, input_size), jnp.float32)
    out_big = jax.block_until_ready(control_vec_forward(x_big, params))
    ref_big = control_vec_reference(x_big, params)
    assert out_big.shape == (600, output_size)
    assert jnp.allclose(out_big, ref_big, atol=2e-3, rtol=2e-3), \
        float(jnp.max(jnp.abs(out_big - ref_big)))

    print("KERNEL_OK")
</pallas_src>

<mosaic_0001>
module attributes {stable_mosaic.version = 11 : i64} {
  func.func @control_vec_kernel(%arg0: i32, %arg1: memref<256x32xf32, #tpu.memory_space<vmem>>, %arg2: memref<32x128xbf16, #tpu.memory_space<vmem>>, %arg3: memref<1x128xf32, #tpu.memory_space<vmem>>, %arg4: memref<128x256xbf16, #tpu.memory_space<vmem>>, %arg5: memref<1x256xf32, #tpu.memory_space<vmem>>, %arg6: memref<256x16xbf16, #tpu.memory_space<vmem>>, %arg7: memref<1x16xf32, #tpu.memory_space<vmem>>, %arg8: memref<256x16xf32, #tpu.memory_space<vmem>>) attributes {dimension_semantics = [#tpu.dimension_semantics<parallel>], iteration_bounds = array<i64: 1>, scalar_prefetch = 0 : i64, scratch_operands = 0 : i64, tpu.core_type = #tpu.core_type<tc>, window_params = [{transform_indices = @transform_0, window_bounds = array<i64: 256, 32>}, {pipeline_mode = #tpu.pipeline_mode<synchronous>, transform_indices = @transform_1, window_bounds = array<i64: 32, 128>}, {pipeline_mode = #tpu.pipeline_mode<synchronous>, transform_indices = @transform_2, window_bounds = array<i64: 1, 128>}, {pipeline_mode = #tpu.pipeline_mode<synchronous>, transform_indices = @transform_3, window_bounds = array<i64: 128, 256>}, {pipeline_mode = #tpu.pipeline_mode<synchronous>, transform_indices = @transform_4, window_bounds = array<i64: 1, 256>}, {pipeline_mode = #tpu.pipeline_mode<synchronous>, transform_indices = @transform_5, window_bounds = array<i64: 256, 16>}, {pipeline_mode = #tpu.pipeline_mode<synchronous>, transform_indices = @transform_6, window_bounds = array<i64: 1, 16>}, {transform_indices = @transform_7, window_bounds = array<i64: 256, 16>}]} {
    %c0 = arith.constant 0 : index
    %c0_0 = arith.constant 0 : index
    %0 = vector.load %arg1[%c0, %c0_0] : memref<256x32xf32, #tpu.memory_space<vmem>>, vector<256x32xf32>
    %1 = arith.truncf %0 : vector<256x32xf32> to vector<256x32xbf16>
    %c0_1 = arith.constant 0 : index
    %c0_2 = arith.constant 0 : index
    %2 = vector.load %arg2[%c0_1, %c0_2] : memref<32x128xbf16, #tpu.memory_space<vmem>>, vector<32x128xbf16>
    %cst = arith.constant dense<0.000000e+00> : vector<256x128xf32>
    %3 = tpu.matmul %1, %2, %cst {dimension_numbers = #tpu.dot_dimension_numbers<[1], [0], [0], [1], [0, 0, 1, 1], [], []>} : vector<256x32xbf16>, vector<32x128xbf16>, vector<256x128xf32> -> vector<256x128xf32>
    %c0_3 = arith.constant 0 : index
    %c0_4 = arith.constant 0 : index
    %4 = vector.load %arg3[%c0_3, %c0_4] : memref<1x128xf32, #tpu.memory_space<vmem>>, vector<1x128xf32>
    %5 = vector.broadcast %4 : vector<1x128xf32> to vector<256x128xf32>
    %6 = arith.addf %3, %5 : vector<256x128xf32>
    %cst_5 = arith.constant 0.000000e+00 : f32
    %7 = vector.broadcast %cst_5 : f32 to vector<256x128xf32>
    %8 = arith.maximumf %6, %7 : vector<256x128xf32>
    %9 = arith.truncf %8 : vector<256x128xf32> to vector<256x128xbf16>
    %c0_6 = arith.constant 0 : index
    %c0_7 = arith.constant 0 : index
    %10 = vector.load %arg4[%c0_6, %c0_7] : memref<128x256xbf16, #tpu.memory_space<vmem>>, vector<128x256xbf16>
    %cst_8 = arith.constant dense<0.000000e+00> : vector<256x256xf32>
    %11 = tpu.matmul %9, %10, %cst_8 {dimension_numbers = #tpu.dot_dimension_numbers<[1], [0], [0], [1], [0, 0, 1, 1], [], []>} : vector<256x128xbf16>, vector<128x256xbf16>, vector<256x256xf32> -> vector<256x256xf32>
    %c0_9 = arith.constant 0 : index
    %c0_10 = arith.constant 0 : index
    %12 = vector.load %arg5[%c0_9, %c0_10] : memref<1x256xf32, #tpu.memory_space<vmem>>, vector<1x256xf32>
    %13 = vector.broadcast %12 : vector<1x256xf32> to vector<256x256xf32>
    %14 = arith.addf %11, %13 : vector<256x256xf32>
    %cst_11 = arith.constant 0.000000e+00 : f32
    %15 = vector.broadcast %cst_11 : f32 to vector<256x256xf32>
    %16 = arith.maximumf %14, %15 : vector<256x256xf32>
    %17 = arith.truncf %16 : vector<256x256xf32> to vector<256x256xbf16>
    %c0_12 = arith.constant 0 : index
    %c0_13 = arith.constant 0 : index
    %18 = vector.load %arg6[%c0_12, %c0_13] : memref<256x16xbf16, #tpu.memory_space<vmem>>, vector<256x16xbf16>
    %cst_14 = arith.constant dense<0.000000e+00> : vector<256x16xf32>
    %19 = tpu.matmul %17, %18, %cst_14 {dimension_numbers = #tpu.dot_dimension_numbers<[1], [0], [0], [1], [0, 0, 1, 1], [], []>} : vector<256x256xbf16>, vector<256x16xbf16>, vector<256x16xf32> -> vector<256x16xf32>
    %c0_15 = arith.constant 0 : index
    %c0_16 = arith.constant 0 : index
    %20 = vector.load %arg7[%c0_15, %c0_16] : memref<1x16xf32, #tpu.memory_space<vmem>>, vector<1x16xf32>
    %21 = vector.broadcast %20 : vector<1x16xf32> to vector<256x16xf32>
    %22 = arith.addf %19, %21 : vector<256x16xf32>
    %c0_17 = arith.constant 0 : index
    %c0_18 = arith.constant 0 : index
    %23 = vector.load %arg8[%c0_17, %c0_18] : memref<256x16xf32, #tpu.memory_space<vmem>>, vector<256x16xf32>
    tpu.vector_store %arg8[%c0_17, %c0_18], %22 {strides = array<i32>} : memref<256x16xf32, #tpu.memory_space<vmem>>, vector<256x16xf32>,
    return
  }
  func.func @transform_0(%arg0: i32) -> (i32, i32) {
    %c0_i32 = arith.constant 0 : i32
    %c0_i32_0 = arith.constant 0 : i32
    return %arg0, %c0_i32 : i32, i32
  }
  func.func @transform_1(%arg0: i32) -> (i32, i32) {
    %c0_i32 = arith.constant 0 : i32
    %c0_i32_0 = arith.constant 0 : i32
    %c0_i32_1 = arith.constant 0 : i32
    return %c0_i32, %c0_i32_0 : i32, i32
  }
  func.func @transform_2(%arg0: i32) -> (i32, i32) {
    %c0_i32 = arith.constant 0 : i32
    %c0_i32_0 = arith.constant 0 : i32
    %c0_i32_1 = arith.constant 0 : i32
    return %c0_i32, %c0_i32_0 : i32, i32
  }
  func.func @transform_3(%arg0: i32) -> (i32, i32) {
    %c0_i32 = arith.constant 0 : i32
    %c0_i32_0 = arith.constant 0 : i32
    %c0_i32_1 = arith.constant 0 : i32
    return %c0_i32, %c0_i32_0 : i32, i32
  }
  func.func @transform_4(%arg0: i32) -> (i32, i32) {
    %c0_i32 = arith.constant 0 : i32
    %c0_i32_0 = arith.constant 0 : i32
    %c0_i32_1 = arith.constant 0 : i32
    return %c0_i32, %c0_i32_0 : i32, i32
  }
  func.func @transform_5(%arg0: i32) -> (i32, i32) {
    %c0_i32 = arith.constant 0 : i32
    %c0_i32_0 = arith.constant 0 : i32
    %c0_i32_1 = arith.constant 0 : i32
    return %c0_i32, %c0_i32_0 : i32, i32
  }
  func.func @transform_6(%arg0: i32) -> (i32, i32) {
    %c0_i32 = arith.constant 0 : i32
    %c0_i32_0 = arith.constant 0 : i32
    %c0_i32_1 = arith.constant 0 : i32
    return %c0_i32, %c0_i32_0 : i32, i32
  }
  func.func @transform_7(%arg0: i32) -> (i32, i32) {
    %c0_i32 = arith.constant 0 : i32
    %c0_i32_0 = arith.constant 0 : i32
    return %arg0, %c0_i32 : i32, i32
  }
}

</mosaic_0001>

<llo_original>
// kernel: tpu_custom_call.1
$region0: #{tpu_custom_call.1}
  #allocation0 [shape = 'u32[]', space=smem, size = 0x4, offset = 0x4, fixed_abs, tag = 'smem constant byte address 0x4 - core index']
  #allocation1 [shape = 'u32[144,128]{1,0:T(1,128)}', space=vmem, size = 0x12000, scoped, tag = 'internal scratch']
  %s0 = inlined_call_operand.hbm [shape: f32[4,32], index: 0, kind: input, shape index: {}]
  %s1 = inlined_call_operand.vmem [shape: bf16[32,128], index: 1, kind: input, shape index: {}]
  %s2 = inlined_call_operand.hbm [shape: f32[1,128], index: 2, kind: input, shape index: {}]
  %s3 = inlined_call_operand.vmem [shape: bf16[128,256], index: 3, kind: input, shape index: {}]
  %s4 = inlined_call_operand.vmem [shape: f32[1,256], index: 4, kind: input, shape index: {}]
  %s5 = inlined_call_operand.vmem [shape: bf16[256,16], index: 5, kind: input, shape index: {}]
  %s6 = inlined_call_operand.vmem [shape: f32[1,16], index: 6, kind: input, shape index: {}]
  %s7 = inlined_call_operand.hbm [shape: f32[4,16], index: 7, kind: output, shape index: {}]
  %s8 = sld [smem:[#allocation0]]
  $region46: #{tpu_custom_call.1} parent=0
    _
  %s10 = ssub.s32 1, %s8
  %s11 = scalar_select 0, %s10, %s8
  $region1: #{tpu_custom_call.1} parent=0
    #allocation2 [shape = 'u8[131072]{0}', space=vmem, size = 0x20000, scoped, tag = 'input window, operand 0, single buffered']
    #allocation3 [shape = 's32[1]{0}', space=sflag, size = 0x4, scoped, tag = 'scoped memory for tpu_custom_call.1']
    #allocation4 [shape = 's32[1]{0}', space=sflag, size = 0x4, scoped, tag = 'scoped memory for tpu_custom_call.1']
    #allocation5 [shape = 'u8[512]{0}', space=vmem, size = 0x400, scoped, tag = 'input window, operand 2, single buffered']
    #allocation6 [shape = 's32[1]{0}', space=sflag, size = 0x4, scoped, tag = 'scoped memory for tpu_custom_call.1']
    #allocation7 [shape = 'u8[131072]{0}', space=vmem, size = 0x20000, scoped, tag = 'output window, operand 0, single buffered']
    %12 = vsyncpa [#allocation3], 0
    %13 = vsyncpa [#allocation6], 0
    %14 = vsyncpa [#allocation4], 0
    // Predicated region
    $region2: #{tpu_custom_call.1} parent=1 // pred_check
      _
    $region3: #{tpu_custom_call.1} parent=1 // pred_check_branch
      %16 = sbr.rel (0) target = $region5
    $region4: #{tpu_custom_call.1} parent=1 // pred_region
      %s18 = ssub.s32 4096, 64
      %19 = vsyncadd [#allocation3], %s18
      %s20 = sshll.u32 [#allocation2], 4
      %s21 = int_to_ptr.vmem [resolvable:$true] %s20
      %26 = dma.hbm_to_vmem [thread:$0]  %s0, 64, %s21, [#allocation3], 64, 64, 4
    $region5: #{tpu_custom_call.1} parent=1 // pred_fallthru
      _
    // Predicated region
    $region6: #{tpu_custom_call.1} parent=1 // pred_check
      _
    $region7: #{tpu_custom_call.1} parent=1 // pred_check_branch
      %28 = sbr.rel (0) target = $region9
    $region8: #{tpu_custom_call.1} parent=1 // pred_region
      _
    $region9: #{tpu_custom_call.1} parent=1 // pred_fallthru
      _
    // Predicated region
    $region10: #{tpu_custom_call.1} parent=1 // pred_check
      _
    $region11: #{tpu_custom_call.1} parent=1 // pred_check_branch
      %30 = sbr.rel (0) target = $region13
    $region12: #{tpu_custom_call.1} parent=1 // pred_region
      %s32 = ssub.s32 16, 16
      %33 = vsyncadd [#allocation6], %s32
      %s35 = sshll.u32 [#allocation5], 4
      %s36 = int_to_ptr.vmem [resolvable:$true] %s35
      %38 = dma.hbm_to_vmem [thread:$0]  %s2, 16, %s36, [#allocation6]
    $region13: #{tpu_custom_call.1} parent=1 // pred_fallthru
      _
    // Predicated region
    $region14: #{tpu_custom_call.1} parent=1 // pred_check
      _
    $region15: #{tpu_custom_call.1} parent=1 // pred_check_branch
      %40 = sbr.rel (0) target = $region17
    $region16: #{tpu_custom_call.1} parent=1 // pred_region
      _
    $region17: #{tpu_custom_call.1} parent=1 // pred_fallthru
      _
    // Predicated region
    $region18: #{tpu_custom_call.1} parent=1 // pred_check
      _
    $region19: #{tpu_custom_call.1} parent=1 // pred_check_branch
      %42 = sbr.rel (0) target = $region21
    $region20: #{tpu_custom_call.1} parent=1 // pred_region
      _
    $region21: #{tpu_custom_call.1} parent=1 // pred_fallthru
      _
    // Predicated region
    $region22: #{tpu_custom_call.1} parent=1 // pred_check
      _
    $region23: #{tpu_custom_call.1} parent=1 // pred_check_branch
      %44 = sbr.rel (0) target = $region25
    $region24: #{tpu_custom_call.1} parent=1 // pred_region
      _
    $region25: #{tpu_custom_call.1} parent=1 // pred_fallthru
      _
    // Predicated region
    $region26: #{tpu_custom_call.1} parent=1 // pred_check
      _
    $region27: #{tpu_custom_call.1} parent=1 // pred_check_branch
      %46 = sbr.rel (0) target = $region29
    $region28: #{tpu_custom_call.1} parent=1 // pred_region
      _
    $region29: #{tpu_custom_call.1} parent=1 // pred_fallthru
      _
    // Predicated region
    $region30: #{tpu_custom_call.1} parent=1 // pred_check
      _
    $region31: #{tpu_custom_call.1} parent=1 // pred_check_branch
      %48 = sbr.rel (0) target = $region33
    $region32: #{tpu_custom_call.1} parent=1 // pred_region
      %49 = dma.done [#allocation3], 4096
    $region33: #{tpu_custom_call.1} parent=1 // pred_fallthru
      _
    // Predicated region
    $region34: #{tpu_custom_call.1} parent=1 // pred_check
      _
    $region35: #{tpu_custom_call.1} parent=1 // pred_check_branch
      %51 = sbr.rel (0) target = $region37
    $region36: #{tpu_custom_call.1} parent=1 // pred_region
      %52 = dma.done [#allocation6], 16
    $region37: #{tpu_custom_call.1} parent=1 // pred_fallthru
      _
    %v54 = vld [vmem:[#allocation2] sm:$0xff]
    %v55 = vld [vmem:[#allocation2 + $0x8] sm:$0xff]
    %v56 = vld [vmem:[#allocation2 + $0x10] sm:$0xff]
    %v57 = vld [vmem:[#allocation2 + $0x18] sm:$0xff]
    %v58 = vld [vmem:[#allocation2 + $0x20] sm:$0xff]
    %v59 = vld [vmem:[#allocation2 + $0x28] sm:$0xff]
    %v60 = vld [vmem:[#allocation2 + $0x30] sm:$0xff]
    %v61 = vld [vmem:[#allocation2 + $0x38] sm:$0xff]
    %v62 = vld [vmem:[#allocation2 + $0x40] sm:$0xff]
    %v63 = vld [vmem:[#allocation2 + $0x48] sm:$0xff]
    %v64 = vld [vmem:[#allocation2 + $0x50] sm:$0xff]
    %v65 = vld [vmem:[#allocation2 + $0x58] sm:$0xff]
    %v66 = vld [vmem:[#allocation2 + $0x60] sm:$0xff]
    %v67 = vld [vmem:[#allocation2 + $0x68] sm:$0xff]
    %v68 = vld [vmem:[#allocation2 + $0x70] sm:$0xff]
    %v69 = vld [vmem:[#allocation2 + $0x78] sm:$0xff]
    %v70 = vld [vmem:[#allocation2 + $0x80] sm:$0xff]
    %v71 = vld [vmem:[#allocation2 + $0x88] sm:$0xff]
    %v72 = vld [vmem:[#allocation2 + $0x90] sm:$0xff]
    %v73 = vld [vmem:[#allocation2 + $0x98] sm:$0xff]
    %v74 = vld [vmem:[#allocation2 + $0xa0] sm:$0xff]
    %v75 = vld [vmem:[#allocation2 + $0xa8] sm:$0xff]
    %v76 = vld [vmem:[#allocation2 + $0xb0] sm:$0xff]
    %v77 = vld [vmem:[#allocation2 + $0xb8] sm:$0xff]
    %v78 = vld [vmem:[#allocation2 + $0xc0] sm:$0xff]
    %v79 = vld [vmem:[#allocation2 + $0xc8] sm:$0xff]
    %v80 = vld [vmem:[#allocation2 + $0xd0] sm:$0xff]
    %v81 = vld [vmem:[#allocation2 + $0xd8] sm:$0xff]
    %v82 = vld [vmem:[#allocation2 + $0xe0] sm:$0xff]
    %v83 = vld [vmem:[#allocation2 + $0xe8] sm:$0xff]
    %v84 = vld [vmem:[#allocation2 + $0xf0] sm:$0xff]
    %v85 = vld [vmem:[#allocation2 + $0xf8] sm:$0xff]
    %v86 = vpack.c.bf16 %v55, %v54
    %v87 = vpack.c.bf16 %v57, %v56
    %v88 = vpack.c.bf16 %v59, %v58
    %v89 = vpack.c.bf16 %v61, %v60
    %v90 = vpack.c.bf16 %v63, %v62
    %v91 = vpack.c.bf16 %v65, %v64
    %v92 = vpack.c.bf16 %v67, %v66
    %v93 = vpack.c.bf16 %v69, %v68
    %v94 = vpack.c.bf16 %v71, %v70
    %v95 = vpack.c.bf16 %v73, %v72
    %v96 = vpack.c.bf16 %v75, %v74
    %v97 = vpack.c.bf16 %v77, %v76
    %v98 = vpack.c.bf16 %v79, %v78
    %v99 = vpack.c.bf16 %v81, %v80
    %v100 = vpack.c.bf16 %v83, %v82
    %v101 = vpack.c.bf16 %v85, %v84
    %v102 = vld [vmem:[%s1] sm:$0xf]
    %v103 = vld [vmem:[%s1 + $0x4] sm:$0xf]
    %v104 = vld [vmem:[%s1 + $0x8] sm:$0xf]
    %v105 = vld [vmem:[%s1 + $0xc] sm:$0xf]
    %v106 = vld [vmem:[#allocation5] sm:$0x1]
    %v108 = vlaneseq
    %v109 = vshrl.u32 %v108, 7
    %v110 = vsub.s32 0, %v109
    %v111 = vrot.slane %v106, %v110
    %v117 = vunpack.c.l.b16 %v102
    %v118 = vunpack.c.l.b16 %v103
    %v119 = vunpack.c.l.b16 %v104
    %v120 = vunpack.c.l.b16 %v105
    %v121 = vpack.c.b16 %v118, %v117
    %v122 = vpack.c.b16 %v120, %v119
    %vm125 = vcmask 261120
    %v127 = vsel %vm125, %v86, 0
    %v130 = vsel %vm125, %v87, 0
    %v133 = vsel %vm125, %v88, 0
    %v136 = vsel %vm125, %v89, 0
    %v139 = vsel %vm125, %v90, 0
    %v142 = vsel %vm125, %v91, 0
    %v145 = vsel %vm125, %v92, 0
    %v148 = vsel %vm125, %v93, 0
    %v151 = vsel %vm125, %v94, 0
    %v154 = vsel %vm125, %v95, 0
    %v157 = vsel %vm125, %v96, 0
    %v160 = vsel %vm125, %v97, 0
    %v163 = vsel %vm125, %v98, 0
    %v166 = vsel %vm125, %v99, 0
    %v169 = vsel %vm125, %v100, 0
    %v172 = vsel %vm125, %v101, 0
    %174 = vmatprep.subr.bf16.mxu0 0
    %175 = vmatpush1.bf16.msra.mxu0 %v121
    %176 = vmatprep.subr.bf16.mxu0 0
    %177 = vmatpush1.bf16.msra.mxu0 %v122
    %178 = vmatprep.subr.bf16.mxu0 0
    %179 = vmatpush1.bf16.msra.mxu0 0
    %180 = vmatprep.subr.bf16.mxu0 0
    %181 = vmatpush1.bf16.msra.mxu0 0
    %182 = vmatprep.subr.bf16.mxu0 0
    %183 = vmatpush1.bf16.msra.mxu0 0
    %184 = vmatprep.subr.bf16.mxu0 0
    %185 = vmatpush1.bf16.msra.mxu0 0
    %186 = vmatprep.subr.bf16.mxu0 0
    %187 = vmatpush1.bf16.msra.mxu0 0
    %188 = vmatprep.subr.bf16.mxu0 0
    %189 = vmatpush1.bf16.msra.mxu0 0
    %190 = vmatprep.subr.bf16.mxu0 0
    %191 = vmatpush1.bf16.msra.mxu0 0
    %192 = vmatprep.subr.bf16.mxu0 0
    %193 = vmatpush1.bf16.msra.mxu0 0
    %194 = vmatprep.subr.bf16.mxu0 0
    %195 = vmatpush1.bf16.msra.mxu0 0
    %196 = vmatprep.subr.bf16.mxu0 0
    %197 = vmatpush1.bf16.msra.mxu0 0
    %198 = vmatprep.subr.bf16.mxu0 0
    %199 = vmatpush1.bf16.msra.mxu0 0
    %200 = vmatprep.subr.bf16.mxu0 0
    %201 = vmatpush1.bf16.msra.mxu0 0
    %202 = vmatprep.subr.bf16.mxu0 0
    %203 = vmatpush1.bf16.msra.mxu0 0
    %204 = vmatprep.subr.bf16.mxu0 0
    %205 = vmatpush1.bf16.msra.mxu0 0
    %206 = vmatprep.mubr.bf16.mxu0 0
    %207 = vmatmul.mubr.bf16.gmra.mrb[0].mxu0 %v127
    %v208 = vpop.f32.mrb[0].mxu0
    %v209 = vadd.f32 %v111, %v208
    %v210 = vpop.f32.mrb[0].mxu0
    %v211 = vpop.f32.mrb[0].mxu0
    %v212 = vadd.f32 %v111, %v211
    %v213 = vpop.f32.mrb[0].mxu0
    %214 = vmatprep.mubr.bf16.mxu0 0
    %215 = vmatmul.mubr.bf16.gmra.mrb[0].mxu0 %v130
    %v216 = vpop.f32.mrb[0].mxu0
    %v217 = vadd.f32 %v111, %v216
    %v218 = vpop.f32.mrb[0].mxu0
    %v219 = vpop.f32.mrb[0].mxu0
    %v220 = vadd.f32 %v111, %v219
    %v221 = vpop.f32.mrb[0].mxu0
    %222 = vmatprep.mubr.bf16.mxu0 0
    %223 = vmatmul.mubr.bf16.gmra.mrb[0].mxu0 %v133
    %v224 = vpop.f32.mrb[0].mxu0
    %v225 = vadd.f32 %v111, %v224
    %v226 = vpop.f32.mrb[0].mxu0
    %v227 = vpop.f32.mrb[0].mxu0
    %v228 = vadd.f32 %v111, %v227
    %v229 = vpop.f32.mrb[0].mxu0
    %230 = vmatprep.mubr.bf16.mxu0 0
    %231 = vmatmul.mubr.bf16.gmra.mrb[0].mxu0 %v136
    %v232 = vpop.f32.mrb[0].mxu0
    %v233 = vadd.f32 %v111, %v232
    %v234 = vpop.f32.mrb[0].mxu0
    %v235 = vpop.f32.mrb[0].mxu0
    %v236 = vadd.f32 %v111, %v235
    %v237 = vpop.f32.mrb[0].mxu0
    %238 = vmatprep.mubr.bf16.mxu0 0
    %239 = vmatmul.mubr.bf16.gmra.mrb[0].mxu0 %v139
    %v240 = vpop.f32.mrb[0].mxu0
    %v241 = vadd.f32 %v111, %v240
    %v242 = vpop.f32.mrb[0].mxu0
    %v243 = vpop.f32.mrb[0].mxu0
    %v244 = vadd.f32 %v111, %v243
    %v245 = vpop.f32.mrb[0].mxu0
    %246 = vmatprep.mubr.bf16.mxu0 0
    %247 = vmatmul.mubr.bf16.gmra.mrb[0].mxu0 %v142
    %v248 = vpop.f32.mrb[0].mxu0
    %v249 = vadd.f32 %v111, %v248
    %v250 = vpop.f32.mrb[0].mxu0
    %v251 = vpop.f32.mrb[0].mxu0
    %v252 = vadd.f32 %v111, %v251
    %v253 = vpop.f32.mrb[0].mxu0
    %254 = vmatprep.mubr.bf16.mxu0 0
    %255 = vmatmul.mubr.bf16.gmra.mrb[0].mxu0 %v145
    %v256 = vpop.f32.mrb[0].mxu0
    %v257 = vadd.f32 %v111, %v256
    %v258 = vpop.f32.mrb[0].mxu0
    %v259 = vpop.f32.mrb[0].mxu0
    %v260 = vadd.f32 %v111, %v259
    %v261 = vpop.f32.mrb[0].mxu0
    %262 = vmatprep.mubr.bf16.mxu0 0
    %263 = vmatmul.mubr.bf16.gmra.mrb[0].mxu0 %v148
    %v264 = vpop.f32.mrb[0].mxu0
    %v265 = vadd.f32 %v111, %v264
    %v266 = vpop.f32.mrb[0].mxu0
    %v267 = vpop.f32.mrb[0].mxu0
    %v268 = vadd.f32 %v111, %v267
    %v269 = vpop.f32.mrb[0].mxu0
    %270 = vmatprep.mubr.bf16.mxu0 0
    %271 = vmatmul.mubr.bf16.gmra.mrb[0].mxu0 %v151
    %v272 = vpop.f32.mrb[0].mxu0
    %v273 = vadd.f32 %v111, %v272
    %v274 = vpop.f32.mrb[0].mxu0
    %v275 = vpop.f32.mrb[0].mxu0
    %v276 = vadd.f32 %v111, %v275
    %v277 = vpop.f32.mrb[0].mxu0
    %278 = vmatprep.mubr.bf16.mxu0 0
    %279 = vmatmul.mubr.bf16.gmra.mrb[0].mxu0 %v154
    %v280 = vpop.f32.mrb[0].mxu0
    %v281 = vadd.f32 %v111, %v280
    %v282 = vpop.f32.mrb[0].mxu0
    %v283 = vpop.f32.mrb[0].mxu0
    %v284 = vadd.f32 %v111, %v283
    %v285 = vpop.f32.mrb[0].mxu0
    %286 = vmatprep.mubr.bf16.mxu0 0
    %287 = vmatmul.mubr.bf16.gmra.mrb[0].mxu0 %v157
    %v288 = vpop.f32.mrb[0].mxu0
    %v289 = vadd.f32 %v111, %v288
    %v290 = vpop.f32.mrb[0].mxu0
    %v291 = vpop.f32.mrb[0].mxu0
    %v292 = vadd.f32 %v111, %v291
    %v293 = vpop.f32.mrb[0].mxu0
    %294 = vmatprep.mubr.bf16.mxu0 0
    %295 = vmatmul.mubr.bf16.gmra.mrb[0].mxu0 %v160
    %v296 = vpop.f32.mrb[0].mxu0
    %v297 = vadd.f32 %v111, %v296
    %v298 = vpop.f32.mrb[0].mxu0
    %v299 = vpop.f32.mrb[0].mxu0
    %v300 = vadd.f32 %v111, %v299
    %v301 = vpop.f32.mrb[0].mxu0
    %302 = vmatprep.mubr.bf16.mxu0 0
    %303 = vmatmul.mubr.bf16.gmra.mrb[0].mxu0 %v163
    %v304 = vpop.f32.mrb[0].mxu0
    %v305 = vadd.f32 %v111, %v304
    %v306 = vpop.f32.mrb[0].mxu0
    %v307 = vpop.f32.mrb[0].mxu0
    %v308 = vadd.f32 %v111, %v307
    %v309 = vpop.f32.mrb[0].mxu0
    %310 = vmatprep.mubr.bf16.mxu0 0
    %311 = vmatmul.mubr.bf16.gmra.mrb[0].mxu0 %v166
    %v312 = vpop.f32.mrb[0].mxu0
    %v313 = vadd.f32 %v111, %v312
    %v314 = vpop.f32.mrb[0].mxu0
    %v315 = vpop.f32.mrb[0].mxu0
    %v316 = vadd.f32 %v111, %v315
    %v317 = vpop.f32.mrb[0].mxu0
    %318 = vmatprep.mubr.bf16.mxu0 0
    %319 = vmatmul.mubr.bf16.gmra.mrb[0].mxu0 %v169
    %v320 = vpop.f32.mrb[0].mxu0
    %v321 = vadd.f32 %v111, %v320
    %v322 = vpop.f32.mrb[0].mxu0
    %v323 = vpop.f32.mrb[0].mxu0
    %v324 = vadd.f32 %v111, %v323
    %v325 = vpop.f32.mrb[0].mxu0
    %326 = vmatprep.mubr.bf16.mxu0 0
    %327 = vmatmul.mubr.bf16.gmra.mrb[0].mxu0 %v172
    %v328 = vpop.f32.mrb[0].mxu0
    %v329 = vadd.f32 %v111, %v328
    %v330 = vpop.f32.mrb[0].mxu0
    %v331 = vpop.f32.mrb[0].mxu0
    %v332 = vadd.f32 %v111, %v331
    %v333 = vpop.f32.mrb[0].mxu0
    %334 = vdwg.mxu0
    %v335 = vmax.f32 %v209, 0.0
    %v336 = vmax.f32 %v212, 0.0
    %v337 = vmax.f32 %v217, 0.0
    %v338 = vmax.f32 %v220, 0.0
    %v339 = vmax.f32 %v225, 0.0
    %v340 = vmax.f32 %v228, 0.0
    %v341 = vmax.f32 %v233, 0.0
    %v342 = vmax.f32 %v236, 0.0
    %v343 = vmax.f32 %v241, 0.0
    %v344 = vmax.f32 %v244, 0.0
    %v345 = vmax.f32 %v249, 0.0
    %v346 = vmax.f32 %v252, 0.0
    %v347 = vmax.f32 %v257, 0.0
    %v348 = vmax.f32 %v260, 0.0
    %v349 = vmax.f32 %v265, 0.0
    %v350 = vmax.f32 %v268, 0.0
    %v351 = vmax.f32 %v273, 0.0
    %v352 = vmax.f32 %v276, 0.0
    %v353 = vmax.f32 %v281, 0.0
    %v354 = vmax.f32 %v284, 0.0
    %v355 = vmax.f32 %v289, 0.0
    %v356 = vmax.f32 %v292, 0.0
    %v357 = vmax.f32 %v297, 0.0
    %v358 = vmax.f32 %v300, 0.0
    %v359 = vmax.f32 %v305, 0.0
    %v360 = vmax.f32 %v308, 0.0
    %v361 = vmax.f32 %v313, 0.0
    %v362 = vmax.f32 %v316, 0.0
    %v363 = vmax.f32 %v321, 0.0
    %v364 = vmax.f32 %v324, 0.0
    %v365 = vmax.f32 %v329, 0.0
    %v366 = vmax.f32 %v332, 0.0
    %v367 = vpack.c.bf16 %v336, %v335
    %v368 = vpack.c.bf16 %v338, %v337
    %v369 = vpack.c.bf16 %v340, %v339
    %v370 = vpack.c.bf16 %v342, %v341
    %v371 = vpack.c.bf16 %v344, %v343
    %v372 = vpack.c.bf16 %v346, %v345
    %v373 = vpack.c.bf16 %v348, %v347
    %v374 = vpack.c.bf16 %v350, %v349
    %v375 = vpack.c.bf16 %v352, %v351
    %v376 = vpack.c.bf16 %v354, %v353
    %v377 = vpack.c.bf16 %v356, %v355
    %v378 = vpack.c.bf16 %v358, %v357
    %v379 = vpack.c.bf16 %v360, %v359
    %v380 = vpack.c.bf16 %v362, %v361
    %v381 = vpack.c.bf16 %v364, %v363
    %v382 = vpack.c.bf16 %v366, %v365
    %v383 = vld [vmem:[%s3] sm:$0xff]
    %v384 = vld [vmem:[%s3 + $0x8] sm:$0xff]
    %v385 = vld [vmem:[%s3 + $0x10] sm:$0xff]
    %v386 = vld [vmem:[%s3 + $0x18] sm:$0xff]
    %v387 = vld [vmem:[%s3 + $0x20] sm:$0xff]
    %v388 = vld [vmem:[%s3 + $0x28] sm:$0xff]
    %v389 = vld [vmem:[%s3 + $0x30] sm:$0xff]
    %v390 = vld [vmem:[%s3 + $0x38] sm:$0xff]
    %v391 = vld [vmem:[%s3 + $0x40] sm:$0xff]
    %v392 = vld [vmem:[%s3 + $0x48] sm:$0xff]
    %v393 = vld [vmem:[%s3 + $0x50] sm:$0xff]
    %v394 = vld [vmem:[%s3 + $0x58] sm:$0xff]
    %v395 = vld [vmem:[%s3 + $0x60] sm:$0xff]
    %v396 = vld [vmem:[%s3 + $0x68] sm:$0xff]
    %v397 = vld [vmem:[%s3 + $0x70] sm:$0xff]
    %v398 = vld [vmem:[%s3 + $0x78] sm:$0xff]
    %v399 = vld [vmem:[%s4] sm:$0x3]
    %v401 = vlaneseq
    %v402 = vshrl.u32 %v401, 7
    %v403 = vsub.s32 0, %v402
    %v404 = vrot.slane %v399, %v403
    %v405 = vlaneseq
    %v406 = vshrl.u32 %v405, 7
    %v407 = vsub.s32 1, %v406
    %v408 = vrot.slane %v399, %v407
    %v427 = vunpack.c.l.b16 %v383
    %v428 = vunpack.c.h.b16 %v383
    %v429 = vunpack.c.l.b16 %v384
    %v430 = vunpack.c.h.b16 %v384
    %v431 = vunpack.c.l.b16 %v385
    %v432 = vunpack.c.h.b16 %v385
    %v433 = vunpack.c.l.b16 %v386
    %v434 = vunpack.c.h.b16 %v386
    %v435 = vunpack.c.l.b16 %v387
    %v436 = vunpack.c.h.b16 %v387
    %v437 = vunpack.c.l.b16 %v388
    %v438 = vunpack.c.h.b16 %v388
    %v439 = vunpack.c.l.b16 %v389
    %v440 = vunpack.c.h.b16 %v389
    %v441 = vunpack.c.l.b16 %v390
    %v442 = vunpack.c.h.b16 %v390
    %v443 = vunpack.c.l.b16 %v391
    %v444 = vunpack.c.h.b16 %v391
    %v445 = vunpack.c.l.b16 %v392
    %v446 = vunpack.c.h.b16 %v392
    %v447 = vunpack.c.l.b16 %v393
    %v448 = vunpack.c.h.b16 %v393
    %v449 = vunpack.c.l.b16 %v394
    %v450 = vunpack.c.h.b16 %v394
    %v451 = vunpack.c.l.b16 %v395
    %v452 = vunpack.c.h.b16 %v395
    %v453 = vunpack.c.l.b16 %v396
    %v454 = vunpack.c.h.b16 %v396
    %v455 = vunpack.c.l.b16 %v397
    %v456 = vunpack.c.h.b16 %v397
    %v457 = vunpack.c.l.b16 %v398
    %v458 = vunpack.c.h.b16 %v398
    %v459 = vpack.c.b16 %v429, %v427
    %v460 = vpack.c.b16 %v430, %v428
    %v461 = vpack.c.b16 %v433, %v431
    %v462 = vpack.c.b16 %v434, %v432
    %v463 = vpack.c.b16 %v437, %v435
    %v464 = vpack.c.b16 %v438, %v436
    %v465 = vpack.c.b16 %v441, %v439
    %v466 = vpack.c.b16 %v442, %v440
    %v467 = vpack.c.b16 %v445, %v443
    %v468 = vpack.c.b16 %v446, %v444
    %v469 = vpack.c.b16 %v449, %v447
    %v470 = vpack.c.b16 %v450, %v448
    %v471 = vpack.c.b16 %v453, %v451
    %v472 = vpack.c.b16 %v454, %v452
    %v473 = vpack.c.b16 %v457, %v455
    %v474 = vpack.c.b16 %v458, %v456
    %491 = vmatprep.subr.bf16.mxu0 %v460
    %492 = vmatpush1.bf16.msra.mxu0 %v459
    %493 = vmatprep.subr.bf16.mxu0 %v462
    %494 = vmatpush1.bf16.msra.mxu0 %v461
    %495 = vmatprep.subr.bf16.mxu0 %v464
    %496 = vmatpush1.bf16.msra.mxu0 %v463
    %497 = vmatprep.subr.bf16.mxu0 %v466
    %498 = vmatpush1.bf16.msra.mxu0 %v465
    %499 = vmatprep.subr.bf16.mxu0 %v468
    %500 = vmatpush1.bf16.msra.mxu0 %v467
    %501 = vmatprep.subr.bf16.mxu0 %v470
    %502 = vmatpush1.bf16.msra.mxu0 %v469
    %503 = vmatprep.subr.bf16.mxu0 %v472
    %504 = vmatpush1.bf16.msra.mxu0 %v471
    %505 = vmatprep.subr.bf16.mxu0 %v474
    %506 = vmatpush1.bf16.msra.mxu0 %v473
    %507 = vmatprep.subr.bf16.mxu0 0
    %508 = vmatpush1.bf16.msra.mxu0 0
    %509 = vmatprep.subr.bf16.mxu0 0
    %510 = vmatpush1.bf16.msra.mxu0 0
    %511 = vmatprep.subr.bf16.mxu0 0
    %512 = vmatpush1.bf16.msra.mxu0 0
    %513 = vmatprep.subr.bf16.mxu0 0
    %514 = vmatpush1.bf16.msra.mxu0 0
    %515 = vmatprep.subr.bf16.mxu0 0
    %516 = vmatpush1.bf16.msra.mxu0 0
    %517 = vmatprep.subr.bf16.mxu0 0
    %518 = vmatpush1.bf16.msra.mxu0 0
    %519 = vmatprep.subr.bf16.mxu0 0
    %520 = vmatpush1.bf16.msra.mxu0 0
    %521 = vmatprep.subr.bf16.mxu0 0
    %522 = vmatpush1.bf16.msra.mxu0 0
    %523 = vmatprep.mubr.bf16.mxu0 0
    %524 = vmatmul.mubr.bf16.gmra.mrb[0].mxu0 %v367
    %v525 = vpop.f32.mrb[0].mxu0
    %v526 = vadd.f32 %v404, %v525
    %v527 = vpop.f32.mrb[0].mxu0
    %v528 = vadd.f32 %v408, %v527
    %v529 = vpop.f32.mrb[0].mxu0
    %v530 = vadd.f32 %v404, %v529
    %v531 = vpop.f32.mrb[0].mxu0
    %v532 = vadd.f32 %v408, %v531
    %533 = vmatprep.mubr.bf16.mxu0 0
    %534 = vmatmul.mubr.bf16.gmra.mrb[0].mxu0 %v368
    %v535 = vpop.f32.mrb[0].mxu0
    %v536 = vadd.f32 %v404, %v535
    %v537 = vpop.f32.mrb[0].mxu0
    %v538 = vadd.f32 %v408, %v537
    %v539 = vpop.f32.mrb[0].mxu0
    %v540 = vadd.f32 %v404, %v539
    %v541 = vpop.f32.mrb[0].mxu0
    %v542 = vadd.f32 %v408, %v541
    %543 = vmatprep.mubr.bf16.mxu0 0
    %544 = vmatmul.mubr.bf16.gmra.mrb[0].mxu0 %v369
    %v545 = vpop.f32.mrb[0].mxu0
    %v546 = vadd.f32 %v404, %v545
    %v547 = vpop.f32.mrb[0].mxu0
    %v548 = vadd.f32 %v408, %v547
    %v549 = vpop.f32.mrb[0].mxu0
    %v550 = vadd.f32 %v404, %v549
    %v551 = vpop.f32.mrb[0].mxu0
    %v552 = vadd.f32 %v408, %v551
    %553 = vmatprep.mubr.bf16.mxu0 0
    %554 = vmatmul.mubr.bf16.gmra.mrb[0].mxu0 %v370
    %v555 = vpop.f32.mrb[0].mxu0
    %v556 = vadd.f32 %v404, %v555
    %v557 = vpop.f32.mrb[0].mxu0
    %v558 = vadd.f32 %v408, %v557
    %v559 = vpop.f32.mrb[0].mxu0
    %v560 = vadd.f32 %v404, %v559
    %v561 = vpop.f32.mrb[0].mxu0
    %v562 = vadd.f32 %v408, %v561
    %563 = vmatprep.mubr.bf16.mxu0 0
    %564 = vmatmul.mubr.bf16.gmra.mrb[0].mxu0 %v371
    %v565 = vpop.f32.mrb[0].mxu0
    %v566 = vadd.f32 %v404, %v565
    %v567 = vpop.f32.mrb[0].mxu0
    %v568 = vadd.f32 %v408, %v567
    %v569 = vpop.f32.mrb[0].mxu0
    %v570 = vadd.f32 %v404, %v569
    %v571 = vpop.f32.mrb[0].mxu0
    %v572 = vadd.f32 %v408, %v571
    %573 = vmatprep.mubr.bf16.mxu0 0
    %574 = vmatmul.mubr.bf16.gmra.mrb[0].mxu0 %v372
    %v575 = vpop.f32.mrb[0].mxu0
    %v576 = vadd.f32 %v404, %v575
    %v577 = vpop.f32.mrb[0].mxu0
    %v578 = vadd.f32 %v408, %v577
    %v579 = vpop.f32.mrb[0].mxu0
    %v580 = vadd.f32 %v404, %v579
    %v581 = vpop.f32.mrb[0].mxu0
    %v582 = vadd.f32 %v408, %v581
    %583 = vmatprep.mubr.bf16.mxu0 0
    %584 = vmatmul.mubr.bf16.gmra.mrb[0].mxu0 %v373
    %v585 = vpop.f32.mrb[0].mxu0
    %v586 = vadd.f32 %v404, %v585
    %v587 = vpop.f32.mrb[0].mxu0
    %v588 = vadd.f32 %v408, %v587
    %v589 = vpop.f32.mrb[0].mxu0
    %v590 = vadd.f32 %v404, %v589
    %v591 = vpop.f32.mrb[0].mxu0
    %v592 = vadd.f32 %v408, %v591
    %593 = vmatprep.mubr.bf16.mxu0 0
    %594 = vmatmul.mubr.bf16.gmra.mrb[0].mxu0 %v374
    %v595 = vpop.f32.mrb[0].mxu0
    %v596 = vadd.f32 %v404, %v595
    %v597 = vpop.f32.mrb[0].mxu0
    %v598 = vadd.f32 %v408, %v597
    %v599 = vpop.f32.mrb[0].mxu0
    %v600 = vadd.f32 %v404, %v599
    %v601 = vpop.f32.mrb[0].mxu0
    %v602 = vadd.f32 %v408, %v601
    %603 = vmatprep.mubr.bf16.mxu0 0
    %604 = vmatmul.mubr.bf16.gmra.mrb[0].mxu0 %v375
    %v605 = vpop.f32.mrb[0].mxu0
    %v606 = vadd.f32 %v404, %v605
    %v607 = vpop.f32.mrb[0].mxu0
    %v608 = vadd.f32 %v408, %v607
    %v609 = vpop.f32.mrb[0].mxu0
    %v610 = vadd.f32 %v404, %v609
    %v611 = vpop.f32.mrb[0].mxu0
    %v612 = vadd.f32 %v408, %v611
    %613 = vmatprep.mubr.bf16.mxu0 0
    %614 = vmatmul.mubr.bf16.gmra.mrb[0].mxu0 %v376
    %v615 = vpop.f32.mrb[0].mxu0
    %v616 = vadd.f32 %v404, %v615
    %v617 = vpop.f32.mrb[0].mxu0
    %v618 = vadd.f32 %v408, %v617
    %v619 = vpop.f32.mrb[0].mxu0
    %v620 = vadd.f32 %v404, %v619
    %v621 = vpop.f32.mrb[0].mxu0
    %v622 = vadd.f32 %v408, %v621
    %623 = vmatprep.mubr.bf16.mxu0 0
    %624 = vmatmul.mubr.bf16.gmra.mrb[0].mxu0 %v377
    %v625 = vpop.f32.mrb[0].mxu0
    %v626 = vadd.f32 %v404, %v625
    %v627 = vpop.f32.mrb[0].mxu0
    %v628 = vadd.f32 %v408, %v627
    %v629 = vpop.f32.mrb[0].mxu0
    %v630 = vadd.f32 %v404, %v629
    %v631 = vpop.f32.mrb[0].mxu0
    %v632 = vadd.f32 %v408, %v631
    %633 = vmatprep.mubr.bf16.mxu0 0
    %634 = vmatmul.mubr.bf16.gmra.mrb[0].mxu0 %v378
    %v635 = vpop.f32.mrb[0].mxu0
    %v636 = vadd.f32 %v404, %v635
    %v637 = vpop.f32.mrb[0].mxu0
    %v638 = vadd.f32 %v408, %v637
    %v639 = vpop.f32.mrb[0].mxu0
    %v640 = vadd.f32 %v404, %v639
    %v641 = vpop.f32.mrb[0].mxu0
    %v642 = vadd.f32 %v408, %v641
    %643 = vmatprep.mubr.bf16.mxu0 0
    %644 = vmatmul.mubr.bf16.gmra.mrb[0].mxu0 %v379
    %v645 = vpop.f32.mrb[0].mxu0
    %v646 = vadd.f32 %v404, %v645
    %v647 = vpop.f32.mrb[0].mxu0
    %v648 = vadd.f32 %v408, %v647
    %v649 = vpop.f32.mrb[0].mxu0
    %v650 = vadd.f32 %v404, %v649
    %v651 = vpop.f32.mrb[0].mxu0
    %v652 = vadd.f32 %v408, %v651
    %653 = vmatprep.mubr.bf16.mxu0 0
    %654 = vmatmul.mubr.bf16.gmra.mrb[0].mxu0 %v380
    %v655 = vpop.f32.mrb[0].mxu0
    %v656 = vadd.f32 %v404, %v655
    %v657 = vpop.f32.mrb[0].mxu0
    %v658 = vadd.f32 %v408, %v657
    %v659 = vpop.f32.mrb[0].mxu0
    %v660 = vadd.f32 %v404, %v659
    %v661 = vpop.f32.mrb[0].mxu0
    %v662 = vadd.f32 %v408, %v661
    %663 = vmatprep.mubr.bf16.mxu0 0
    %664 = vmatmul.mubr.bf16.gmra.mrb[0].mxu0 %v381
    %v665 = vpop.f32.mrb[0].mxu0
    %v666 = vadd.f32 %v404, %v665
    %v667 = vpop.f32.mrb[0].mxu0
    %v668 = vadd.f32 %v408, %v667
    %v669 = vpop.f32.mrb[0].mxu0
    %v670 = vadd.f32 %v404, %v669
    %v671 = vpop.f32.mrb[0].mxu0
    %v672 = vadd.f32 %v408, %v671
    %673 = vmatprep.mubr.bf16.mxu0 0
    %674 = vmatmul.mubr.bf16.gmra.mrb[0].mxu0 %v382
    %v675 = vpop.f32.mrb[0].mxu0
    %v676 = vadd.f32 %v404, %v675
    %v677 = vpop.f32.mrb[0].mxu0
    %v678 = vadd.f32 %v408, %v677
    %v679 = vpop.f32.mrb[0].mxu0
    %v680 = vadd.f32 %v404, %v679
    %v681 = vpop.f32.mrb[0].mxu0
    %v682 = vadd.f32 %v408, %v681
    %683 = vdwg.mxu0
    %v684 = vmax.f32 %v526, 0.0
    %v685 = vmax.f32 %v528, 0.0
    %v686 = vmax.f32 %v530, 0.0
    %v687 = vmax.f32 %v532, 0.0
    %v688 = vmax.f32 %v536, 0.0
    %v689 = vmax.f32 %v538, 0.0
    %v690 = vmax.f32 %v540, 0.0
    %v691 = vmax.f32 %v542, 0.0
    %v692 = vmax.f32 %v546, 0.0
    %v693 = vmax.f32 %v548, 0.0
    %v694 = vmax.f32 %v550, 0.0
    %v695 = vmax.f32 %v552, 0.0
    %v696 = vmax.f32 %v556, 0.0
    %v697 = vmax.f32 %v558, 0.0
    %v698 = vmax.f32 %v560, 0.0
    %v699 = vmax.f32 %v562, 0.0
    %v700 = vmax.f32 %v566, 0.0
    %v701 = vmax.f32 %v568, 0.0
    %v702 = vmax.f32 %v570, 0.0
    %v703 = vmax.f32 %v572, 0.0
    %v704 = vmax.f32 %v576, 0.0
    %v705 = vmax.f32 %v578, 0.0
    %v706 = vmax.f32 %v580, 0.0
    %v707 = vmax.f32 %v582, 0.0
    %v708 = vmax.f32 %v586, 0.0
    %v709 = vmax.f32 %v588, 0.0
    %v710 = vmax.f32 %v590, 0.0
    %v711 = vmax.f32 %v592, 0.0
    %v712 = vmax.f32 %v596, 0.0
    %v713 = vmax.f32 %v598, 0.0
    %v714 = vmax.f32 %v600, 0.0
    %v715 = vmax.f32 %v602, 0.0
    %v716 = vmax.f32 %v606, 0.0
    %v717 = vmax.f32 %v608, 0.0
    %v718 = vmax.f32 %v610, 0.0
    %v719 = vmax.f32 %v612, 0.0
    %v720 = vmax.f32 %v616, 0.0
    %v721 = vmax.f32 %v618, 0.0
    %v722 = vmax.f32 %v620, 0.0
    %v723 = vmax.f32 %v622, 0.0
    %v724 = vmax.f32 %v626, 0.0
    %v725 = vmax.f32 %v628, 0.0
    %v726 = vmax.f32 %v630, 0.0
    %v727 = vmax.f32 %v632, 0.0
    %v728 = vmax.f32 %v636, 0.0
    %v729 = vmax.f32 %v638, 0.0
    %v730 = vmax.f32 %v640, 0.0
    %v731 = vmax.f32 %v642, 0.0
    %v732 = vmax.f32 %v646, 0.0
    %v733 = vmax.f32 %v648, 0.0
    %v734 = vmax.f32 %v650, 0.0
    %v735 = vmax.f32 %v652, 0.0
    %v736 = vmax.f32 %v656, 0.0
    %v737 = vmax.f32 %v658, 0.0
    %v738 = vmax.f32 %v660, 0.0
    %v739 = vmax.f32 %v662, 0.0
    %v740 = vmax.f32 %v666, 0.0
    %v741 = vmax.f32 %v668, 0.0
    %v742 = vmax.f32 %v670, 0.0
    %v743 = vmax.f32 %v672, 0.0
    %v744 = vmax.f32 %v676, 0.0
    %v745 = vmax.f32 %v678, 0.0
    %v746 = vmax.f32 %v680, 0.0
    %v747 = vmax.f32 %v682, 0.0
    %v748 = vpack.c.bf16 %v686, %v684
    %v749 = vpack.c.bf16 %v687, %v685
    %v750 = vpack.c.bf16 %v690, %v688
    %v751 = vpack.c.bf16 %v691, %v689
    %v752 = vpack.c.bf16 %v694, %v692
    %v753 = vpack.c.bf16 %v695, %v693
    %v754 = vpack.c.bf16 %v698, %v696
    %v755 = vpack.c.bf16 %v699, %v697
    %v756 = vpack.c.bf16 %v702, %v700
    %v757 = vpack.c.bf16 %v703, %v701
    %v758 = vpack.c.bf16 %v706, %v704
    %v759 = vpack.c.bf16 %v707, %v705
    %v760 = vpack.c.bf16 %v710, %v708
    %v761 = vpack.c.bf16 %v711, %v709
    %v762 = vpack.c.bf16 %v714, %v712
    %v763 = vpack.c.bf16 %v715, %v713
    %v764 = vpack.c.bf16 %v718, %v716
    %v765 = vpack.c.bf16 %v719, %v717
    %v766 = vpack.c.bf16 %v722, %v720
    %v767 = vpack.c.bf16 %v723, %v721
    %v768 = vpack.c.bf16 %v726, %v724
    %v769 = vpack.c.bf16 %v727, %v725
    %v770 = vpack.c.bf16 %v730, %v728
    %v771 = vpack.c.bf16 %v731, %v729
    %v772 = vpack.c.bf16 %v734, %v732
    %v773 = vpack.c.bf16 %v735, %v733
    %v774 = vpack.c.bf16 %v738, %v736
    %v775 = vpack.c.bf16 %v739, %v737
    %v776 = vpack.c.bf16 %v742, %v740
    %v777 = vpack.c.bf16 %v743, %v741
    %v778 = vpack.c.bf16 %v746, %v744
    %v779 = vpack.c.bf16 %v747, %v745
    %v780 = vld [vmem:[%s5] sm:$0xf]
    %v781 = vld [vmem:[%s5 + $0x4] sm:$0xf]
    %v782 = vld [vmem:[%s5 + $0x8] sm:$0xf]
    %v783 = vld [vmem:[%s5 + $0xc] sm:$0xf]
    %v784 = vld [vmem:[%s5 + $0x10] sm:$0xf]
    %v785 = vld [vmem:[%s5 + $0x14] sm:$0xf]
    %v786 = vld [vmem:[%s5 + $0x18] sm:$0xf]
    %v787 = vld [vmem:[%s5 + $0x1c] sm:$0xf]
    %v788 = vld [vmem:[%s5 + $0x20] sm:$0xf]
    %v789 = vld [vmem:[%s5 + $0x24] sm:$0xf]
    %v790 = vld [vmem:[%s5 + $0x28] sm:$0xf]
    %v791 = vld [vmem:[%s5 + $0x2c] sm:$0xf]
    %v792 = vld [vmem:[%s5 + $0x30] sm:$0xf]
    %v793 = vld [vmem:[%s5 + $0x34] sm:$0xf]
    %v794 = vld [vmem:[%s5 + $0x38] sm:$0xf]
    %v795 = vld [vmem:[%s5 + $0x3c] sm:$0xf]
    %v796 = vld [vmem:[%s5 + $0x40] sm:$0xf]
    %v797 = vld [vmem:[%s5 + $0x44] sm:$0xf]
    %v798 = vld [vmem:[%s5 + $0x48] sm:$0xf]
    %v799 = vld [vmem:[%s5 + $0x4c] sm:$0xf]
    %v800 = vld [vmem:[%s5 + $0x50] sm:$0xf]
    %v801 = vld [vmem:[%s5 + $0x54] sm:$0xf]
    %v802 = vld [vmem:[%s5 + $0x58] sm:$0xf]
    %v803 = vld [vmem:[%s5 + $0x5c] sm:$0xf]
    %v804 = vld [vmem:[%s5 + $0x60] sm:$0xf]
    %v805 = vld [vmem:[%s5 + $0x64] sm:$0xf]
    %v806 = vld [vmem:[%s5 + $0x68] sm:$0xf]
    %v807 = vld [vmem:[%s5 + $0x6c] sm:$0xf]
    %v808 = vld [vmem:[%s5 + $0x70] sm:$0xf]
    %v809 = vld [vmem:[%s5 + $0x74] sm:$0xf]
    %v810 = vld [vmem:[%s5 + $0x78] sm:$0xf]
    %v811 = vld [vmem:[%s5 + $0x7c] sm:$0xf]
    %v812 = vld [vmem:[%s6] sm:$0x1]
    %v814 = vlaneseq
    %v815 = vshrl.u32 %v814, 7
    %v816 = vsub.s32 0, %v815
    %v817 = vrot.slane %v812, %v816
    %v851 = vunpack.c.l.b16 %v780
    %v852 = vunpack.c.l.b16 %v781
    %v853 = vunpack.c.l.b16 %v782
    %v854 = vunpack.c.l.b16 %v783
    %v855 = vunpack.c.l.b16 %v784
    %v856 = vunpack.c.l.b16 %v785
    %v857 = vunpack.c.l.b16 %v786
    %v858 = vunpack.c.l.b16 %v787
    %v859 = vunpack.c.l.b16 %v788
    %v860 = vunpack.c.l.b16 %v789
    %v861 = vunpack.c.l.b16 %v790
    %v862 = vunpack.c.l.b16 %v791
    %v863 = vunpack.c.l.b16 %v792
    %v864 = vunpack.c.l.b16 %v793
    %v865 = vunpack.c.l.b16 %v794
    %v866 = vunpack.c.l.b16 %v795
    %v867 = vunpack.c.l.b16 %v796
    %v868 = vunpack.c.l.b16 %v797
    %v869 = vunpack.c.l.b16 %v798
    %v870 = vunpack.c.l.b16 %v799
    %v871 = vunpack.c.l.b16 %v800
    %v872 = vunpack.c.l.b16 %v801
    %v873 = vunpack.c.l.b16 %v802
    %v874 = vunpack.c.l.b16 %v803
    %v875 = vunpack.c.l.b16 %v804
    %v876 = vunpack.c.l.b16 %v805
    %v877 = vunpack.c.l.b16 %v806
    %v878 = vunpack.c.l.b16 %v807
    %v879 = vunpack.c.l.b16 %v808
    %v880 = vunpack.c.l.b16 %v809
    %v881 = vunpack.c.l.b16 %v810
    %v882 = vunpack.c.l.b16 %v811
    %v883 = vpack.c.b16 %v852, %v851
    %v884 = vpack.c.b16 %v854, %v853
    %v885 = vpack.c.b16 %v856, %v855
    %v886 = vpack.c.b16 %v858, %v857
    %v887 = vpack.c.b16 %v860, %v859
    %v888 = vpack.c.b16 %v862, %v861
    %v889 = vpack.c.b16 %v864, %v863
    %v890 = vpack.c.b16 %v866, %v865
    %v891 = vpack.c.b16 %v868, %v867
    %v892 = vpack.c.b16 %v870, %v869
    %v893 = vpack.c.b16 %v872, %v871
    %v894 = vpack.c.b16 %v874, %v873
    %v895 = vpack.c.b16 %v876, %v875
    %v896 = vpack.c.b16 %v878, %v877
    %v897 = vpack.c.b16 %v880, %v879
    %v898 = vpack.c.b16 %v882, %v881
    %915 = vmatprep.subr.bf16.mxu0 0
    %916 = vmatpush1.bf16.msra.mxu0 %v883
    %917 = vmatprep.subr.bf16.mxu0 0
    %918 = vmatpush1.bf16.msra.mxu0 %v884
    %919 = vmatprep.subr.bf16.mxu0 0
    %920 = vmatpush1.bf16.msra.mxu0 %v885
    %921 = vmatprep.subr.bf16.mxu0 0
    %922 = vmatpush1.bf16.msra.mxu0 %v886
    %923 = vmatprep.subr.bf16.mxu0 0
    %924 = vmatpush1.bf16.msra.mxu0 %v887
    %925 = vmatprep.subr.bf16.mxu0 0
    %926 = vmatpush1.bf16.msra.mxu0 %v888
    %927 = vmatprep.subr.bf16.mxu0 0
    %928 = vmatpush1.bf16.msra.mxu0 %v889
    %929 = vmatprep.subr.bf16.mxu0 0
    %930 = vmatpush1.bf16.msra.mxu0 %v890
    %931 = vmatprep.subr.bf16.mxu0 0
    %932 = vmatpush1.bf16.msra.mxu0 %v891
    %933 = vmatprep.subr.bf16.mxu0 0
    %934 = vmatpush1.bf16.msra.mxu0 %v892
    %935 = vmatprep.subr.bf16.mxu0 0
    %936 = vmatpush1.bf16.msra.mxu0 %v893
    %937 = vmatprep.subr.bf16.mxu0 0
    %938 = vmatpush1.bf16.msra.mxu0 %v894
    %939 = vmatprep.subr.bf16.mxu0 0
    %940 = vmatpush1.bf16.msra.mxu0 %v895
    %941 = vmatprep.subr.bf16.mxu0 0
    %942 = vmatpush1.bf16.msra.mxu0 %v896
    %943 = vmatprep.subr.bf16.mxu0 0
    %944 = vmatpush1.bf16.msra.mxu0 %v897
    %945 = vmatprep.subr.bf16.mxu0 0
    %946 = vmatpush1.bf16.msra.mxu0 %v898
    %947 = vmatprep.mubr.bf16.mxu0 %v749
    %948 = vmatmul.mubr.bf16.gmra.mrb[0].mxu0 %v748
    %v949 = vpop.f32.mrb[0].mxu0
    %v950 = vadd.f32 %v817, %v949
    %v951 = vpop.f32.mrb[0].mxu0
    %v952 = vpop.f32.mrb[0].mxu0
    %v953 = vadd.f32 %v817, %v952
    %v954 = vpop.f32.mrb[0].mxu0
    %955 = vmatprep.mubr.bf16.mxu0 %v751
    %956 = vmatmul.mubr.bf16.gmra.mrb[0].mxu0 %v750
    %v957 = vpop.f32.mrb[0].mxu0
    %v958 = vadd.f32 %v817, %v957
    %v959 = vpop.f32.mrb[0].mxu0
    %v960 = vpop.f32.mrb[0].mxu0
    %v961 = vadd.f32 %v817, %v960
    %v962 = vpop.f32.mrb[0].mxu0
    %963 = vmatprep.mubr.bf16.mxu0 %v753
    %964 = vmatmul.mubr.bf16.gmra.mrb[0].mxu0 %v752
    %v965 = vpop.f32.mrb[0].mxu0
    %v966 = vadd.f32 %v817, %v965
    %v967 = vpop.f32.mrb[0].mxu0
    %v968 = vpop.f32.mrb[0].mxu0
    %v969 = vadd.f32 %v817, %v968
    %v970 = vpop.f32.mrb[0].mxu0
    %971 = vmatprep.mubr.bf16.mxu0 %v755
    %972 = vmatmul.mubr.bf16.gmra.mrb[0].mxu0 %v754
    %v973 = vpop.f32.mrb[0].mxu0
    %v974 = vadd.f32 %v817, %v973
    %v975 = vpop.f32.mrb[0].mxu0
    %v976 = vpop.f32.mrb[0].mxu0
    %v977 = vadd.f32 %v817, %v976
    %v978 = vpop.f32.mrb[0].mxu0
    %979 = vmatprep.mubr.bf16.mxu0 %v757
    %980 = vmatmul.mubr.bf16.gmra.mrb[0].mxu0 %v756
    %v981 = vpop.f32.mrb[0].mxu0
    %v982 = vadd.f32 %v817, %v981
    %v983 = vpop.f32.mrb[0].mxu0
    %v984 = vpop.f32.mrb[0].mxu0
    %v985 = vadd.f32 %v817, %v984
    %v986 = vpop.f32.mrb[0].mxu0
    %987 = vmatprep.mubr.bf16.mxu0 %v759
    %988 = vmatmul.mubr.bf16.gmra.mrb[0].mxu0 %v758
    %v989 = vpop.f32.mrb[0].mxu0
    %v990 = vadd.f32 %v817, %v989
    %v991 = vpop.f32.mrb[0].mxu0
    %v992 = vpop.f32.mrb[0].mxu0
    %v993 = vadd.f32 %v817, %v992
    %v994 = vpop.f32.mrb[0].mxu0
    %995 = vmatprep.mubr.bf16.mxu0 %v761
    %996 = vmatmul.mubr.bf16.gmra.mrb[0].mxu0 %v760
    %v997 = vpop.f32.mrb[0].mxu0
    %v998 = vadd.f32 %v817, %v997
    %v999 = vpop.f32.mrb[0].mxu0
    %v1000 = vpop.f32.mrb[0].mxu0
    %v1001 = vadd.f32 %v817, %v1000
    %v1002 = vpop.f32.mrb[0].mxu0
    %1003 = vmatprep.mubr.bf16.mxu0 %v763
    %1004 = vmatmul.mubr.bf16.gmra.mrb[0].mxu0 %v762
    %v1005 = vpop.f32.mrb[0].mxu0
    %v1006 = vadd.f32 %v817, %v1005
    %v1007 = vpop.f32.mrb[0].mxu0
    %v1008 = vpop.f32.mrb[0].mxu0
    %v1009 = vadd.f32 %v817, %v1008
    %v1010 = vpop.f32.mrb[0].mxu0
    %1011 = vmatprep.mubr.bf16.mxu0 %v765
    %1012 = vmatmul.mubr.bf16.gmra.mrb[0].mxu0 %v764
    %v1013 = vpop.f32.mrb[0].mxu0
    %v1014 = vadd.f32 %v817, %v1013
    %v1015 = vpop.f32.mrb[0].mxu0
    %v1016 = vpop.f32.mrb[0].mxu0
    %v1017 = vadd.f32 %v817, %v1016
    %v1018 = vpop.f32.mrb[0].mxu0
    %1019 = vmatprep.mubr.bf16.mxu0 %v767
    %1020 = vmatmul.mubr.bf16.gmra.mrb[0].mxu0 %v766
    %v1021 = vpop.f32.mrb[0].mxu0
    %v1022 = vadd.f32 %v817, %v1021
    %v1023 = vpop.f32.mrb[0].mxu0
    %v1024 = vpop.f32.mrb[0].mxu0
    %v1025 = vadd.f32 %v817, %v1024
    %v1026 = vpop.f32.mrb[0].mxu0
    %1027 = vmatprep.mubr.bf16.mxu0 %v769
    %1028 = vmatmul.mubr.bf16.gmra.mrb[0].mxu0 %v768
    %v1029 = vpop.f32.mrb[0].mxu0
    %v1030 = vadd.f32 %v817, %v1029
    %v1031 = vpop.f32.mrb[0].mxu0
    %v1032 = vpop.f32.mrb[0].mxu0
    %v1033 = vadd.f32 %v817, %v1032
    %v1034 = vpop.f32.mrb[0].mxu0
    %1035 = vmatprep.mubr.bf16.mxu0 %v771
    %1036 = vmatmul.mubr.bf16.gmra.mrb[0].mxu0 %v770
    %v1037 = vpop.f32.mrb[0].mxu0
    %v1038 = vadd.f32 %v817, %v1037
    %v1039 = vpop.f32.mrb[0].mxu0
    %v1040 = vpop.f32.mrb[0].mxu0
    %v1041 = vadd.f32 %v817, %v1040
    %v1042 = vpop.f32.mrb[0].mxu0
    %1043 = vmatprep.mubr.bf16.mxu0 %v773
    %1044 = vmatmul.mubr.bf16.gmra.mrb[0].mxu0 %v772
    %v1045 = vpop.f32.mrb[0].mxu0
    %v1046 = vadd.f32 %v817, %v1045
    %v1047 = vpop.f32.mrb[0].mxu0
    %v1048 = vpop.f32.mrb[0].mxu0
    %v1049 = vadd.f32 %v817, %v1048
    %v1050 = vpop.f32.mrb[0].mxu0
    %1051 = vmatprep.mubr.bf16.mxu0 %v775
    %1052 = vmatmul.mubr.bf16.gmra.mrb[0].mxu0 %v774
    %v1053 = vpop.f32.mrb[0].mxu0
    %v1054 = vadd.f32 %v817, %v1053
    %v1055 = vpop.f32.mrb[0].mxu0
    %v1056 = vpop.f32.mrb[0].mxu0
    %v1057 = vadd.f32 %v817, %v1056
    %v1058 = vpop.f32.mrb[0].mxu0
    %1059 = vmatprep.mubr.bf16.mxu0 %v777
    %1060 = vmatmul.mubr.bf16.gmra.mrb[0].mxu0 %v776
    %v1061 = vpop.f32.mrb[0].mxu0
    %v1062 = vadd.f32 %v817, %v1061
    %v1063 = vpop.f32.mrb[0].mxu0
    %v1064 = vpop.f32.mrb[0].mxu0
    %v1065 = vadd.f32 %v817, %v1064
    %v1066 = vpop.f32.mrb[0].mxu0
    %1067 = vmatprep.mubr.bf16.mxu0 %v779
    %1068 = vmatmul.mubr.bf16.gmra.mrb[0].mxu0 %v778
    %v1069 = vpop.f32.mrb[0].mxu0
    %v1070 = vadd.f32 %v817, %v1069
    %v1071 = vpop.f32.mrb[0].mxu0
    %v1072 = vpop.f32.mrb[0].mxu0
    %v1073 = vadd.f32 %v817, %v1072
    %v1074 = vpop.f32.mrb[0].mxu0
    %1075 = vdwg.mxu0
    %vm1076 = vcmask 130048
    %1077 = vst.msk [vmem:[#allocation7] sm:$0xff] %vm1076, %v950
    %1078 = vst.msk [vmem:[#allocation7 + $0x8] sm:$0xff] %vm1076, %v953
    %1079 = vst.msk [vmem:[#allocation7 + $0x10] sm:$0xff] %vm1076, %v958
    %1080 = vst.msk [vmem:[#allocation7 + $0x18] sm:$0xff] %vm1076, %v961
    %1081 = vst.msk [vmem:[#allocation7 + $0x20] sm:$0xff] %vm1076, %v966
    %1082 = vst.msk [vmem:[#allocation7 + $0x28] sm:$0xff] %vm1076, %v969
    %1083 = vst.msk [vmem:[#allocation7 + $0x30] sm:$0xff] %vm1076, %v974
    %1084 = vst.msk [vmem:[#allocation7 + $0x38] sm:$0xff] %vm1076, %v977
    %1085 = vst.msk [vmem:[#allocation7 + $0x40] sm:$0xff] %vm1076, %v982
    %1086 = vst.msk [vmem:[#allocation7 + $0x48] sm:$0xff] %vm1076, %v985
    %1087 = vst.msk [vmem:[#allocation7 + $0x50] sm:$0xff] %vm1076, %v990
    %1088 = vst.msk [vmem:[#allocation7 + $0x58] sm:$0xff] %vm1076, %v993
    %1089 = vst.msk [vmem:[#allocation7 + $0x60] sm:$0xff] %vm1076, %v998
    %1090 = vst.msk [vmem:[#allocation7 + $0x68] sm:$0xff] %vm1076, %v1001
    %1091 = vst.msk [vmem:[#allocation7 + $0x70] sm:$0xff] %vm1076, %v1006
    %1092 = vst.msk [vmem:[#allocation7 + $0x78] sm:$0xff] %vm1076, %v1009
    %1093 = vst.msk [vmem:[#allocation7 + $0x80] sm:$0xff] %vm1076, %v1014
    %1094 = vst.msk [vmem:[#allocation7 + $0x88] sm:$0xff] %vm1076, %v1017
    %1095 = vst.msk [vmem:[#allocation7 + $0x90] sm:$0xff] %vm1076, %v1022
    %1096 = vst.msk [vmem:[#allocation7 + $0x98] sm:$0xff] %vm1076, %v1025
    %1097 = vst.msk [vmem:[#allocation7 + $0xa0] sm:$0xff] %vm1076, %v1030
    %1098 = vst.msk [vmem:[#allocation7 + $0xa8] sm:$0xff] %vm1076, %v1033
    %1099 = vst.msk [vmem:[#allocation7 + $0xb0] sm:$0xff] %vm1076, %v1038
    %1100 = vst.msk [vmem:[#allocation7 + $0xb8] sm:$0xff] %vm1076, %v1041
    %1101 = vst.msk [vmem:[#allocation7 + $0xc0] sm:$0xff] %vm1076, %v1046
    %1102 = vst.msk [vmem:[#allocation7 + $0xc8] sm:$0xff] %vm1076, %v1049
    %1103 = vst.msk [vmem:[#allocation7 + $0xd0] sm:$0xff] %vm1076, %v1054
    %1104 = vst.msk [vmem:[#allocation7 + $0xd8] sm:$0xff] %vm1076, %v1057
    %1105 = vst.msk [vmem:[#allocation7 + $0xe0] sm:$0xff] %vm1076, %v1062
    %1106 = vst.msk [vmem:[#allocation7 + $0xe8] sm:$0xff] %vm1076, %v1065
    %1107 = vst.msk [vmem:[#allocation7 + $0xf0] sm:$0xff] %vm1076, %v1070
    %1108 = vst.msk [vmem:[#allocation7 + $0xf8] sm:$0xff] %vm1076, %v1073
    // Predicated region
    $region38: #{tpu_custom_call.1} parent=1 // pred_check
      _
    $region39: #{tpu_custom_call.1} parent=1 // pred_check_branch
      %1110 = sbr.rel (0) target = $region41
    $region40: #{tpu_custom_call.1} parent=1 // pred_region
      %s1112 = ssub.s32 4096, 64
      %1113 = vsyncadd [#allocation4], %s1112
      %s1114 = sshll.u32 [#allocation7], 4
      %s1115 = int_to_ptr.vmem [resolvable:$true] %s1114
      %1120 = dma.vmem_to_hbm [thread:$0]  %s1115, 64, %s7, [#allocation4], 64, 64, 4
    $region41: #{tpu_custom_call.1} parent=1 // pred_fallthru
      _
    // Predicated region
    $region42: #{tpu_custom_call.1} parent=1 // pred_check
      _
    $region43: #{tpu_custom_call.1} parent=1 // pred_check_branch
      %1122 = sbr.rel (0) target = $region45
    $region44: #{tpu_custom_call.1} parent=1 // pred_region
      %1123 = dma.done [#allocation4], 4096
    $region45: #{tpu_custom_call.1} parent=1 // pred_fallthru
      _
    %1124 = vsyncpa [#allocation3], 1
    %1125 = vsyncpa [#allocation6], 1
    %1126 = vsyncpa [#allocation4], 1

</llo_original>
